<compile_context>
chip_gen: v7x
topology: tpu7x:2x2x1
jax: 0.10.0
libtpu: 0.0.40
codegen_flags: <defaults>
</compile_context>

<pallas_src>
import functools

import jax
import jax.numpy as jnp
from jax import lax
from jax.experimental import pallas as pl
from jax.experimental.pallas import tpu as pltpu


_VMEM_LIMIT_BYTES = 32 * 1024 * 1024  # requested scoped VMEM; <= physical on v5e/v6e/v7x


# --------------------------------------------------------------------------
# kernel
# --------------------------------------------------------------------------
def _tv_kernel(masks_ref, x_ref, h_out_ref, w_out_ref, acc_h_ref, acc_w_ref,
               *, shift_h, shift_w, block_imgs, num_imgs, need_row_mask):
    # masks_ref : (2, H*W) f32   row0 = vertical-pair mask, row1 = horizontal
    # x_ref     : (g, H*W) native dtype -- g flattened images (batch*channel)
    # *_out_ref : (1, 1, 1) f32  per-parallel-chunk partial sums
    # acc_*_ref : (g, H*W) f32   VMEM scratch, resident across the step axis
    p = pl.program_id(0)          # parallel chunk (megacore)
    s = pl.program_id(1)          # step within the chunk

    @pl.when(s == 0)
    def _init():
        acc_h_ref[...] = jnp.zeros_like(acc_h_ref)
        acc_w_ref[...] = jnp.zeros_like(acc_w_ref)

    x = x_ref[...].astype(jnp.float32)          # in-kernel upcast (free on VPU)
    mask_h = masks_ref[0:1, :]                  # (1, H*W)
    mask_w = masks_ref[1:2, :]

    # Neighbour "one image-row below" / "one column right" via lane rolls;
    # the wrapped positions are exactly the masked boundary positions.
    dh = pltpu.roll(x, shift_h, axis=1) - x
    dw = pltpu.roll(x, shift_w, axis=1) - x
    ch = dh * dh * mask_h
    cw = dw * dw * mask_w

    if need_row_mask:
        # Last block may overhang the image axis; kill the garbage rows.
        base = (p * pl.num_programs(1) + s) * block_imgs
        row = base + lax.broadcasted_iota(jnp.int32, (block_imgs, 1), 0)
        valid = row < num_imgs
        ch = jnp.where(valid, ch, 0.0)
        cw = jnp.where(valid, cw, 0.0)

    acc_h_ref[...] += ch                        # pure VPU, hides under the DMA
    acc_w_ref[...] += cw

    @pl.when(s == pl.num_programs(1) - 1)
    def _finalize():                            # one reduce per parallel chunk
        h_out_ref[...] = jnp.sum(acc_h_ref[...]).reshape(1, 1, 1)
        w_out_ref[...] = jnp.sum(acc_w_ref[...]).reshape(1, 1, 1)


# --------------------------------------------------------------------------
# block sizing
# --------------------------------------------------------------------------
def _images_per_block(num_imgs, hw, itemsize):
    """Images per grid block, sized against the real pipelined VMEM footprint:
    2x input block (double buffering, native dtype) + 2 f32 accumulators +
    ~2 f32 temporaries per element, with headroom under the scoped limit."""
    per_img = hw * (2 * itemsize + 4 * 4)
    budget = _VMEM_LIMIT_BYTES - (2 << 20)
    cap = max(budget // per_img, 1)
    # TODO(synk): images larger than the per-block budget would need H-tiling
    # with a 1-row halo; for now such images fall through with cap == 1.
    if num_imgs <= cap:
        return num_imgs                # one block covers the whole image axis
    g = max((cap // 8) * 8, 8)         # tiled: keep the sublane dim a multiple of 8
    return min(g, num_imgs)


# --------------------------------------------------------------------------
# wrapper
# --------------------------------------------------------------------------
def tv_loss(x, tv_weight=1.0):
    """Pallas TPU implementation of L_TV.forward (input NCHW, returns scalar)."""
    n, c, h, w = x.shape
    num_imgs = n * c
    hw = h * w
    x2 = x.reshape(num_imgs, hw)       # lane-dense: whole image on the lane axis

    g = _images_per_block(num_imgs, hw, x2.dtype.itemsize)
    blocks = pl.cdiv(num_imgs, g)
    n_par = 2 if (blocks >= 2 and blocks % 2 == 0) else 1   # v7x: 2 TensorCores
    n_steps = blocks // n_par
    need_row_mask = (blocks * g != num_imgs)

    # Boundary masks (1.0 = valid neighbour pair), built from static shapes.
    idx = jnp.arange(hw, dtype=jnp.int32)
    mask_h = (idx < (h - 1) * w).astype(jnp.float32)        # image rows 0..H-2
    mask_w = ((idx % w) != (w - 1)).astype(jnp.float32)     # image cols 0..W-2
    masks = jnp.stack([mask_h, mask_w], axis=0)             # (2, H*W)

    kernel = functools.partial(
        _tv_kernel,
        shift_h=(hw - w) % hw,         # lane roll bringing x[r+1, c] onto x[r, c]
        shift_w=(hw - 1) % hw,         # lane roll bringing x[r, c+1] onto x[r, c]
        block_imgs=g,
        num_imgs=num_imgs,
        need_row_mask=need_row_mask,
    )

    h_parts, w_parts = pl.pallas_call(
        kernel,
        out_shape=(jax.ShapeDtypeStruct((n_par, 1, 1), jnp.float32),
                   jax.ShapeDtypeStruct((n_par, 1, 1), jnp.float32)),
        grid=(n_par, n_steps),
        in_specs=[
            pl.BlockSpec((2, hw), lambda p, s: (0, 0)),
            pl.BlockSpec((g, hw), lambda p, s: (p * n_steps + s, 0)),
        ],
        out_specs=(
            pl.BlockSpec((1, 1, 1), lambda p, s: (p, 0, 0)),
            pl.BlockSpec((1, 1, 1), lambda p, s: (p, 0, 0)),
        ),
        scratch_shapes=[
            pltpu.VMEM((g, hw), jnp.float32),
            pltpu.VMEM((g, hw), jnp.float32),
        ],
        compiler_params=pltpu.CompilerParams(
            dimension_semantics=("parallel", "arbitrary"),
            vmem_limit_bytes=_VMEM_LIMIT_BYTES,
        ),
    )(masks, x2)

    h_tv = jnp.sum(h_parts)
    w_tv = jnp.sum(w_parts)
    count_h = (h - 1) * w
    count_w = h * (w - 1)
    return tv_weight * 2.0 * (h_tv / count_h + w_tv / count_w) / n


if __name__ == "__main__":
    key = jax.random.PRNGKey(0)
    x = jax.random.normal(key, (2, 4, 16, 16), dtype=jnp.float32)

    loss_fn = jax.jit(functools.partial(tv_loss, tv_weight=1.0))
    out = loss_fn(x)
    jax.block_until_ready(out)

    # Pure-JAX reference (mirrors the torch forward exactly).
    def ref(x):
        n, c, h, w = x.shape
        h_tv = jnp.sum((x[:, :, 1:, :] - x[:, :, :-1, :]) ** 2)
        w_tv = jnp.sum((x[:, :, :, 1:] - x[:, :, :, :-1]) ** 2)
        return 2.0 * (h_tv / ((h - 1) * w) + w_tv / (h * (w - 1))) / n

    expected = ref(x)
    assert out.shape == (), out.shape
    assert jnp.allclose(out, expected, rtol=1e-5, atol=1e-6), (out, expected)
    print("KERNEL_OK")
</pallas_src>

<mosaic_0001>
module attributes {stable_mosaic.version = 11 : i64} {
  func.func @_tv_kernel(%arg0: i32, %arg1: i32, %arg2: memref<2x256xf32, #tpu.memory_space<vmem>>, %arg3: memref<8x256xf32, #tpu.memory_space<vmem>>, %arg4: memref<1x1x1xf32, #tpu.memory_space<vmem>>, %arg5: memref<1x1x1xf32, #tpu.memory_space<vmem>>, %arg6: memref<8x256xf32, #tpu.memory_space<vmem>>, %arg7: memref<8x256xf32, #tpu.memory_space<vmem>>) attributes {dimension_semantics = [#tpu.dimension_semantics<parallel>, #tpu.dimension_semantics<arbitrary>], iteration_bounds = array<i64: 1, 1>, scalar_prefetch = 0 : i64, scratch_operands = 2 : i64, tpu.core_type = #tpu.core_type<tc>, window_params = [{pipeline_mode = #tpu.pipeline_mode<synchronous>, transform_indices = @transform_0, window_bounds = array<i64: 2, 256>}, {transform_indices = @transform_1, window_bounds = array<i64: 8, 256>}, {transform_indices = @transform_2, window_bounds = array<i64: 1, 1, 1>}, {transform_indices = @transform_3, window_bounds = array<i64: 1, 1, 1>}]} {
    %c0_i32 = arith.constant 0 : i32
    %0 = arith.cmpi eq, %arg1, %c0_i32 : i32
    %1 = arith.extui %0 : i1 to i32
    %c0_i32_0 = arith.constant 0 : i32
    %2 = arith.cmpi ne, %1, %c0_i32_0 : i32
    scf.if %2 {
      %cst = arith.constant 0.000000e+00 : f32
      %25 = vector.broadcast %cst : f32 to vector<8x256xf32>
      %c0_15 = arith.constant 0 : index
      %c0_16 = arith.constant 0 : index
      %26 = vector.load %arg6[%c0_15, %c0_16] : memref<8x256xf32, #tpu.memory_space<vmem>>, vector<8x256xf32>
      tpu.vector_store %arg6[%c0_15, %c0_16], %25 {strides = array<i32>} : memref<8x256xf32, #tpu.memory_space<vmem>>, vector<8x256xf32>,
      %cst_17 = arith.constant 0.000000e+00 : f32
      %27 = vector.broadcast %cst_17 : f32 to vector<8x256xf32>
      %c0_18 = arith.constant 0 : index
      %c0_19 = arith.constant 0 : index
      %28 = vector.load %arg7[%c0_18, %c0_19] : memref<8x256xf32, #tpu.memory_space<vmem>>, vector<8x256xf32>
      tpu.vector_store %arg7[%c0_18, %c0_19], %27 {strides = array<i32>} : memref<8x256xf32, #tpu.memory_space<vmem>>, vector<8x256xf32>,
    } else {
    }
    %c0 = arith.constant 0 : index
    %c0_1 = arith.constant 0 : index
    %3 = vector.load %arg3[%c0, %c0_1] : memref<8x256xf32, #tpu.memory_space<vmem>>, vector<8x256xf32>
    %c0_2 = arith.constant 0 : index
    %c0_3 = arith.constant 0 : index
    %4 = vector.load %arg2[%c0_2, %c0_3] : memref<2x256xf32, #tpu.memory_space<vmem>>, vector<1x256xf32>
    %c1 = arith.constant 1 : index
    %c0_4 = arith.constant 0 : index
    %5 = vector.load %arg2[%c1, %c0_4] : memref<2x256xf32, #tpu.memory_space<vmem>>, vector<1x256xf32>
    %c240_i32 = arith.constant 240 : i32
    %6 = tpu.dynamic_rotate %3 by %c240_i32 dim 1 : vector<8x256xf32>, i32 -> vector<8x256xf32>
    %7 = arith.subf %6, %3 : vector<8x256xf32>
    %c255_i32 = arith.constant 255 : i32
    %8 = tpu.dynamic_rotate %3 by %c255_i32 dim 1 : vector<8x256xf32>, i32 -> vector<8x256xf32>
    %9 = arith.subf %8, %3 : vector<8x256xf32>
    %10 = arith.mulf %7, %7 : vector<8x256xf32>
    %11 = vector.broadcast %4 : vector<1x256xf32> to vector<8x256xf32>
    %12 = arith.mulf %10, %11 : vector<8x256xf32>
    %13 = arith.mulf %9, %9 : vector<8x256xf32>
    %14 = vector.broadcast %5 : vector<1x256xf32> to vector<8x256xf32>
    %15 = arith.mulf %13, %14 : vector<8x256xf32>
    %c0_5 = arith.constant 0 : index
    %c0_6 = arith.constant 0 : index
    %16 = vector.load %arg6[%c0_5, %c0_6] : memref<8x256xf32, #tpu.memory_space<vmem>>, vector<8x256xf32>
    %17 = arith.addf %16, %12 : vector<8x256xf32>
    %c0_7 = arith.constant 0 : index
    %c0_8 = arith.constant 0 : index
    %18 = vector.load %arg6[%c0_7, %c0_8] : memref<8x256xf32, #tpu.memory_space<vmem>>, vector<8x256xf32>
    tpu.vector_store %arg6[%c0_7, %c0_8], %17 {strides = array<i32>} : memref<8x256xf32, #tpu.memory_space<vmem>>, vector<8x256xf32>,
    %c0_9 = arith.constant 0 : index
    %c0_10 = arith.constant 0 : index
    %19 = vector.load %arg7[%c0_9, %c0_10] : memref<8x256xf32, #tpu.memory_space<vmem>>, vector<8x256xf32>
    %20 = arith.addf %19, %15 : vector<8x256xf32>
    %c0_11 = arith.constant 0 : index
    %c0_12 = arith.constant 0 : index
    %21 = vector.load %arg7[%c0_11, %c0_12] : memref<8x256xf32, #tpu.memory_space<vmem>>, vector<8x256xf32>
    tpu.vector_store %arg7[%c0_11, %c0_12], %20 {strides = array<i32>} : memref<8x256xf32, #tpu.memory_space<vmem>>, vector<8x256xf32>,
    %c0_i32_13 = arith.constant 0 : i32
    %22 = arith.cmpi eq, %arg1, %c0_i32_13 : i32
    %23 = arith.extui %22 : i1 to i32
    %c0_i32_14 = arith.constant 0 : i32
    %24 = arith.cmpi ne, %23, %c0_i32_14 : i32
    scf.if %24 {
      %c0_15 = arith.constant 0 : index
      %c0_16 = arith.constant 0 : index
      %25 = vector.load %arg6[%c0_15, %c0_16] : memref<8x256xf32, #tpu.memory_space<vmem>>, vector<8x256xf32>
      %26 = vector.shape_cast %25 : vector<8x256xf32> to vector<1x8x256xf32>
      %cst = arith.constant dense<0.000000e+00> : vector<1xf32>
      %27 = vector.multi_reduction <add>, %26, %cst [1, 2] : vector<1x8x256xf32> to vector<1xf32>
      %28 = vector.shape_cast %27 : vector<1xf32> to vector<1x1x1xf32>
      %29 = vector.extract %28[0, 0, 0] : f32 from vector<1x1x1xf32>
      %30 = vector.broadcast %29 : f32 to vector<1x1x1xf32>
      %c0_17 = arith.constant 0 : index
      %c0_18 = arith.constant 0 : index
      %c0_19 = arith.constant 0 : index
      %31 = vector.load %arg4[%c0_17, %c0_18, %c0_19] : memref<1x1x1xf32, #tpu.memory_space<vmem>>, vector<1x1x1xf32>
      tpu.vector_store %arg4[%c0_17, %c0_18, %c0_19], %30 {strides = array<i32>} : memref<1x1x1xf32, #tpu.memory_space<vmem>>, vector<1x1x1xf32>,
      %c0_20 = arith.constant 0 : index
      %c0_21 = arith.constant 0 : index
      %32 = vector.load %arg7[%c0_20, %c0_21] : memref<8x256xf32, #tpu.memory_space<vmem>>, vector<8x256xf32>
      %33 = vector.shape_cast %32 : vector<8x256xf32> to vector<1x8x256xf32>
      %cst_22 = arith.constant dense<0.000000e+00> : vector<1xf32>
      %34 = vector.multi_reduction <add>, %33, %cst_22 [1, 2] : vector<1x8x256xf32> to vector<1xf32>
      %35 = vector.shape_cast %34 : vector<1xf32> to vector<1x1x1xf32>
      %36 = vector.extract %35[0, 0, 0] : f32 from vector<1x1x1xf32>
      %37 = vector.broadcast %36 : f32 to vector<1x1x1xf32>
      %c0_23 = arith.constant 0 : index
      %c0_24 = arith.constant 0 : index
      %c0_25 = arith.constant 0 : index
      %38 = vector.load %arg5[%c0_23, %c0_24, %c0_25] : memref<1x1x1xf32, #tpu.memory_space<vmem>>, vector<1x1x1xf32>
      tpu.vector_store %arg5[%c0_23, %c0_24, %c0_25], %37 {strides = array<i32>} : memref<1x1x1xf32, #tpu.memory_space<vmem>>, vector<1x1x1xf32>,
    } else {
    }
    return
  }
  func.func @transform_0(%arg0: i32, %arg1: i32) -> (i32, i32) {
    %c0_i32 = arith.constant 0 : i32
    %c0_i32_0 = arith.constant 0 : i32
    %c0_i32_1 = arith.constant 0 : i32
    return %c0_i32, %c0_i32_0 : i32, i32
  }
  func.func @transform_1(%arg0: i32, %arg1: i32) -> (i32, i32) {
    %c1_i32 = arith.constant 1 : i32
    %0 = arith.muli %arg0, %c1_i32 : i32
    %1 = arith.addi %0, %arg1 : i32
    %c0_i32 = arith.constant 0 : i32
    %c0_i32_0 = arith.constant 0 : i32
    return %1, %c0_i32 : i32, i32
  }
  func.func @transform_2(%arg0: i32, %arg1: i32) -> (i32, i32, i32) {
    %c0_i32 = arith.constant 0 : i32
    %c0_i32_0 = arith.constant 0 : i32
    %c0_i32_1 = arith.constant 0 : i32
    return %arg0, %c0_i32, %c0_i32_0 : i32, i32, i32
  }
  func.func @transform_3(%arg0: i32, %arg1: i32) -> (i32, i32, i32) {
    %c0_i32 = arith.constant 0 : i32
    %c0_i32_0 = arith.constant 0 : i32
    %c0_i32_1 = arith.constant 0 : i32
    return %arg0, %c0_i32, %c0_i32_0 : i32, i32, i32
  }
}

</mosaic_0001>

<llo_original>
// kernel: tv_loss.1
$region0: #{tv_loss.1}
  #allocation0 [shape = 'u32[]', space=smem, size = 0x4, offset = 0x4, fixed_abs, tag = 'smem constant byte address 0x4 - core index']
  #allocation1 [shape = 'u32[144,128]{1,0:T(1,128)}', space=vmem, size = 0x12000, scoped, tag = 'internal scratch']
  #allocation2 [shape = 'f32[8,256]{1,0:T(8,128)}', space=vmem, size = 0x2000, scoped, tag = 'scratch operand']
  #allocation3 [shape = 'f32[8,256]{1,0:T(8,128)}', space=vmem, size = 0x2000, scoped, tag = 'scratch operand']
  %s0 = inlined_call_operand.vmem [shape: f32[2,256], index: 0, kind: input, shape index: {}]
  %s1 = inlined_call_operand.vmem [shape: f32[8,256], index: 1, kind: input, shape index: {}]
  %s2 = inlined_call_operand.hbm [shape: f32[1,1,1], index: 2, kind: output, shape index: {0}]
  %s3 = inlined_call_operand.hbm [shape: f32[1,1,1], index: 3, kind: output, shape index: {1}]
  %4 = xla_tuple %s2, %s3
  %s5 = sld [smem:[#allocation0]]
  $region34: #{tv_loss.1} parent=0
    _
  %s7 = ssub.s32 1, %s5
  %s8 = scalar_select 0, %s7, %s5
  $region1: #{tv_loss.1} parent=0
    #allocation4 [shape = 'u8[512]{0}', space=vmem, size = 0x400, scoped, tag = 'output window, operand 0, single buffered']
    #allocation5 [shape = 's32[1]{0}', space=sflag, size = 0x4, scoped, tag = 'scoped memory for tv_loss.1']
    #allocation6 [shape = 'u8[512]{0}', space=vmem, size = 0x400, scoped, tag = 'output window, operand 1, single buffered']
    #allocation7 [shape = 's32[1]{0}', space=sflag, size = 0x4, scoped, tag = 'scoped memory for tv_loss.1']
    %9 = vsyncpa [#allocation5], 0
    %10 = vsyncpa [#allocation7], 0
    // Predicated region
    $region2: #{tv_loss.1} parent=1 // pred_check
      _
    $region3: #{tv_loss.1} parent=1 // pred_check_branch
      %12 = sbr.rel (0) target = $region5
    $region4: #{tv_loss.1} parent=1 // pred_region
      _
    $region5: #{tv_loss.1} parent=1 // pred_fallthru
      _
    // Predicated region
    $region6: #{tv_loss.1} parent=1 // pred_check
      _
    $region7: #{tv_loss.1} parent=1 // pred_check_branch
      %14 = sbr.rel (0) target = $region9
    $region8: #{tv_loss.1} parent=1 // pred_region
      %s15 = sadd.s32 0, 0
      %p16 = scmp.lt.s32.totalorder %s15, 0
      %s17 = scalar_select %p16, %s15, 0
      %s18 = smul.addr %s17, 2
      %s19 = smul.addr %s18, 8
      %s20 = scalar_lea.vmem %s1, %s19
      %s21 = sadd.s32 0, 0
    $region9: #{tv_loss.1} parent=1 // pred_fallthru
      _
    %s22 = sadd.s32 0, 0
    %p23 = scmp.lt.s32.totalorder %s22, 0
    %s24 = scalar_select %p23, %s22, 0
    %s25 = smul.addr %s24, 2
    %s26 = smul.addr %s25, 8
    %s27 = scalar_lea.vmem %s1, %s26
    %s28 = sadd.s32 0, 0
    %p29 = scmp.lt.s32.totalorder %s28, 0
    %s30 = scalar_select %p29, %s28, 0
    %s31 = smul.addr %s30, 2
    %s32 = smul.addr %s31, 8
    %s33 = scalar_lea.vmem %s1, %s32
    %s34 = sadd.s32 0, 0
    %p35 = scmp.eq.s32.totalorder 0, 0
    // Predicated region
    $region10: #{tv_loss.1} parent=1 // pred_check
      %p36 = pneg %p35
    $region11: #{tv_loss.1} parent=1 // pred_check_branch
      %38 = sbr.rel (%p36) target = $region13
    $region12: #{tv_loss.1} parent=1 // pred_region
      %39 = vst [vmem:[#allocation2] sm:$0xff] 0.0
      %40 = vst [vmem:[#allocation2 + $0x8] sm:$0xff] 0.0
      %41 = vst [vmem:[#allocation3] sm:$0xff] 0.0
      %42 = vst [vmem:[#allocation3 + $0x8] sm:$0xff] 0.0
    $region13: #{tv_loss.1} parent=1 // pred_fallthru
      _
    %v43 = vld [vmem:[%s33] sm:$0xff]
    %v44 = vld [vmem:[%s33 + $0x8] sm:$0xff]
    %v45 = vld [vmem:[%s0] ss:$2 sm:$0x3]
    %s46 = scalar_lea.vmem %s0, 1
    %v47 = vld [vmem:[%s46] ss:$2 sm:$0x3]
    %48 = vrot.lane.b32.xlu0 %v43, 112
    %v49 = vpop.permute.xlu0 %48
    %50 = vrot.lane.b32.xlu0 %v44, 112
    %v51 = vpop.permute.xlu0 %50
    %v52 = vlaneseq
    %v53 = vand.u32 %v52, 127
    %vm54 = vcmp.lt.s32.totalorder %v53, 112
    %v55 = vsel %vm54, %v49, %v51
    %v56 = vsel %vm54, %v51, %v49
    %v57 = vsub.f32 %v55, %v43
    %v58 = vsub.f32 %v56, %v44
    %59 = vrot.lane.b32.xlu0 %v43, 127
    %v60 = vpop.permute.xlu0 %59
    %61 = vrot.lane.b32.xlu0 %v44, 127
    %v62 = vpop.permute.xlu0 %61
    %vm63 = vcmp.lt.s32.totalorder %v53, 127
    %v64 = vsel %vm63, %v60, %v62
    %v65 = vsel %vm63, %v62, %v60
    %v66 = vsub.f32 %v64, %v43
    %v67 = vsub.f32 %v65, %v44
    %v68 = vmul.f32 %v57, %v57
    %v69 = vmul.f32 %v58, %v58
    %v71 = vlaneseq
    %v72 = vshrl.u32 %v71, 7
    %v73 = vsub.s32 0, %v72
    %v74 = vrot.slane %v45, %v73
    %v75 = vlaneseq
    %v76 = vshrl.u32 %v75, 7
    %v77 = vsub.s32 1, %v76
    %v78 = vrot.slane %v45, %v77
    %v81 = vmul.f32 %v68, %v74
    %v82 = vmul.f32 %v69, %v78
    %v83 = vmul.f32 %v66, %v66
    %v84 = vmul.f32 %v67, %v67
    %v86 = vlaneseq
    %v87 = vshrl.u32 %v86, 7
    %v88 = vsub.s32 0, %v87
    %v89 = vrot.slane %v47, %v88
    %v90 = vlaneseq
    %v91 = vshrl.u32 %v90, 7
    %v92 = vsub.s32 1, %v91
    %v93 = vrot.slane %v47, %v92
    %v96 = vmul.f32 %v83, %v89
    %v97 = vmul.f32 %v84, %v93
    %v98 = vld [vmem:[#allocation2] sm:$0xff]
    %v99 = vld [vmem:[#allocation2 + $0x8] sm:$0xff]
    %v100 = vadd.f32 %v98, %v81
    %v101 = vadd.f32 %v99, %v82
    %102 = vst [vmem:[#allocation2] sm:$0xff] %v100
    %103 = vst [vmem:[#allocation2 + $0x8] sm:$0xff] %v101
    %v104 = vld [vmem:[#allocation3] sm:$0xff]
    %v105 = vld [vmem:[#allocation3 + $0x8] sm:$0xff]
    %v106 = vadd.f32 %v104, %v96
    %v107 = vadd.f32 %v105, %v97
    %108 = vst [vmem:[#allocation3] sm:$0xff] %v106
    %109 = vst [vmem:[#allocation3 + $0x8] sm:$0xff] %v107
    // Predicated region
    $region14: #{tv_loss.1} parent=1 // pred_check
      %p110 = pneg %p35
    $region15: #{tv_loss.1} parent=1 // pred_check_branch
      %112 = sbr.rel (%p110) target = $region17
    $region16: #{tv_loss.1} parent=1 // pred_region
      %v113 = vld [vmem:[#allocation2] sm:$0xff]
      %v114 = vld [vmem:[#allocation2 + $0x8] sm:$0xff]
      %v115 = vadd.f32 %v113, %v114
      %116 = vadd.xlane.f32.xlu0 %v115
      %v117 = vpop.xlane.xlu0 %116
      %v118 = vrot.slane %v117, 4
      %v119 = vadd.f32 %v117, %v118
      %v120 = vrot.slane %v119, 2
      %v121 = vadd.f32 %v119, %v120
      %v122 = vrot.slane %v121, 1
      %v123 = vadd.f32 %v121, %v122
      %s124 = vtos %v123
      %v125 = vstv %s124
      %vm126 = vcmask 0
      %127 = vst.msk [vmem:[#allocation4] sm:$0x1] %vm126, %v125
      %v128 = vld [vmem:[#allocation3] sm:$0xff]
      %v129 = vld [vmem:[#allocation3 + $0x8] sm:$0xff]
      %v130 = vadd.f32 %v128, %v129
      %131 = vadd.xlane.f32.xlu0 %v130
      %v132 = vpop.xlane.xlu0 %131
      %v133 = vrot.slane %v132, 4
      %v134 = vadd.f32 %v132, %v133
      %v135 = vrot.slane %v134, 2
      %v136 = vadd.f32 %v134, %v135
      %v137 = vrot.slane %v136, 1
      %v138 = vadd.f32 %v136, %v137
      %s139 = vtos %v138
      %v140 = vstv %s139
      %141 = vst.msk [vmem:[#allocation6] sm:$0x1] %vm126, %v140
    $region17: #{tv_loss.1} parent=1 // pred_fallthru
      _
    // Predicated region
    $region18: #{tv_loss.1} parent=1 // pred_check
      _
    $region19: #{tv_loss.1} parent=1 // pred_check_branch
      %143 = sbr.rel (0) target = $region21
    $region20: #{tv_loss.1} parent=1 // pred_region
      %s145 = ssub.s32 16, 16
      %146 = vsyncadd [#allocation5], %s145
      %s148 = sshll.u32 [#allocation4], 4
      %s149 = int_to_ptr.vmem [resolvable:$true] %s148
      %151 = dma.vmem_to_hbm [thread:$0]  %s149, 16, %s2, [#allocation5]
    $region21: #{tv_loss.1} parent=1 // pred_fallthru
      _
    // Predicated region
    $region22: #{tv_loss.1} parent=1 // pred_check
      _
    $region23: #{tv_loss.1} parent=1 // pred_check_branch
      %153 = sbr.rel (0) target = $region25
    $region24: #{tv_loss.1} parent=1 // pred_region
      %s155 = ssub.s32 16, 16
      %156 = vsyncadd [#allocation7], %s155
      %s158 = sshll.u32 [#allocation6], 4
      %s159 = int_to_ptr.vmem [resolvable:$true] %s158
      %161 = dma.vmem_to_hbm [thread:$0]  %s159, 16, %s3, [#allocation7]
    $region25: #{tv_loss.1} parent=1 // pred_fallthru
      _
    // Predicated region
    $region26: #{tv_loss.1} parent=1 // pred_check
      _
    $region27: #{tv_loss.1} parent=1 // pred_check_branch
      %163 = sbr.rel (0) target = $region29
    $region28: #{tv_loss.1} parent=1 // pred_region
      %164 = dma.done [#allocation5], 16
    $region29: #{tv_loss.1} parent=1 // pred_fallthru
      _
    // Predicated region
    $region30: #{tv_loss.1} parent=1 // pred_check
      _
    $region31: #{tv_loss.1} parent=1 // pred_check_branch
      %166 = sbr.rel (0) target = $region33
    $region32: #{tv_loss.1} parent=1 // pred_region
      %167 = dma.done [#allocation7], 16
    $region33: #{tv_loss.1} parent=1 // pred_fallthru
      _
    %168 = vsyncpa [#allocation5], 1
    %169 = vsyncpa [#allocation7], 1

</llo_original>
